<compile_context>
chip_gen: v7x
topology: tpu7x:2x2x1
jax: 0.10.0
libtpu: 0.0.40
codegen_flags: <defaults>
</compile_context>

<pallas_src>
import functools

import jax
import jax.numpy as jnp
from jax.experimental import pallas as pl
from jax.experimental.pallas import tpu as pltpu


def mlp_kernel(x_ref, w1_ref, b1_ref, w2_ref, b2_ref, o_ref, acc_ref):
    """One (batch-tile, hidden-tile) step of relu(x @ W1 + b1) @ W2 + b2."""
    h_idx = pl.program_id(1)

    @pl.when(h_idx == 0)
    def _():
        acc_ref[...] = jnp.zeros_like(acc_ref)

    # hidden = relu(x @ W1[:, hblk] + b1[hblk])  -- f32 accumulation on MXU
    h = jnp.dot(x_ref[...], w1_ref[...], preferred_element_type=jnp.float32)
    h = jnp.maximum(h + b1_ref[...], 0.0)
    # partial output accumulation: hidden @ W2[hblk, :]
    acc_ref[...] += jnp.dot(h.astype(w2_ref.dtype), w2_ref[...],
                            preferred_element_type=jnp.float32)

    @pl.when(h_idx == pl.num_programs(1) - 1)
    def _():
        o_ref[...] = (acc_ref[...] + b2_ref[...]).astype(o_ref.dtype)


def _round_up(x, m):
    return ((x + m - 1) // m) * m


@functools.partial(jax.jit,
                   static_argnames=("batch_tile", "hidden_tile", "use_bf16"))
def net_forward(x, w1, b1, w2, b2, *,
                batch_tile=512, hidden_tile=512, use_bf16=True):
    """relu(x @ w1 + b1) @ w2 + b2  (Net.forward), padding/tiling handled here.

    x: (batch, n_feature); w1: (n_feature, n_hidden); b1: (1, n_hidden) or (n_hidden,)
    w2: (n_hidden, n_output); b2: (1, n_output) or (n_output,)
    """
    batch, n_feature = x.shape
    n_hidden = w1.shape[1]
    n_output = w2.shape[1]
    b1 = b1.reshape(1, n_hidden)
    b2 = b2.reshape(1, n_output)

    out_dtype = x.dtype
    cdt = jnp.bfloat16 if use_bf16 else jnp.float32

    # ---- tiling decisions ------------------------------------------------
    # Hidden / output (lane) dims padded to 128 multiples; K stays unpadded
    # because the x / W1 blocks span the full n_feature extent.
    Hp = _round_up(n_hidden, 128)
    Np = _round_up(n_output, 128)

    # Hidden tile: single pass when small, else 128-multiple chunks so VMEM
    # use does not grow with n_hidden (accumulator over grid axis 1).
    if Hp <= hidden_tile:
        TH = Hp
    else:
        TH = 128
        for cand in (512, 256, 128):
            if cand <= hidden_tile and Hp % cand == 0:
                TH = cand
                break

    # Batch tile: sublane-aligned (16 rows for bf16 packing, 8 for f32),
    # shrunk adaptively so batch-padding waste stays small.
    min_align = 16 if use_bf16 else 8
    TB = max(min_align,
             min(_round_up(batch_tile, min_align), _round_up(batch, min_align)))
    while TB >= 2 * min_align and 2 * (_round_up(batch, TB) - batch) > TB:
        TB = _round_up(TB // 2, min_align)
    Bp = _round_up(batch, TB)
    # Give the "parallel" batch axis >=2 steps when possible (v7x: 2 TCs/chip).
    if Bp // TB == 1 and TB >= 2 * min_align:
        TB = _round_up((TB + 1) // 2, min_align)
        Bp = _round_up(batch, TB)

    # ---- pad / cast operands (only where actually needed) -----------------
    x_in = x.astype(cdt)
    if Bp != batch:
        x_in = jnp.pad(x_in, ((0, Bp - batch), (0, 0)))

    w1p = w1.astype(cdt)
    if Hp != n_hidden:
        w1p = jnp.pad(w1p, ((0, 0), (0, Hp - n_hidden)))
    b1p = b1.astype(jnp.float32)
    if Hp != n_hidden:
        b1p = jnp.pad(b1p, ((0, 0), (0, Hp - n_hidden)))
    w2p = w2.astype(cdt)
    if (Hp, Np) != (n_hidden, n_output):
        w2p = jnp.pad(w2p, ((0, Hp - n_hidden), (0, Np - n_output)))
    b2p = b2.astype(jnp.float32)
    if Np != n_output:
        b2p = jnp.pad(b2p, ((0, 0), (0, Np - n_output)))

    grid = (Bp // TB, Hp // TH)

    itemsize = 2 if use_bf16 else 4
    out_itemsize = jnp.dtype(out_dtype).itemsize
    flops = 2 * Bp * (n_feature * Hp + Hp * Np)
    bytes_accessed = (Bp * n_feature * itemsize
                      + (Bp // TB) * (n_feature * Hp + Hp * Np) * itemsize
                      + (Hp + Np) * 4
                      + Bp * Np * out_itemsize)

    # Explicit scoped-VMEM budget (double-buffered tiles + f32 accumulator),
    # with 2x headroom for layout padding; capped at v7x's 64 MiB physical VMEM.
    vmem_bytes = (2 * TB * max(n_feature, 128) * itemsize   # x tile (lane pad)
                  + 2 * n_feature * TH * itemsize           # W1 tile
                  + 2 * 8 * TH * 4                          # b1 tile
                  + 2 * TH * Np * itemsize                  # W2 tile
                  + 2 * 8 * Np * 4                          # b2 tile
                  + 2 * TB * Np * out_itemsize              # out tile
                  + TB * Np * 4)                            # accumulator
    vmem_limit = int(min(max(2 * vmem_bytes, 32 * 1024 * 1024),
                         64 * 1024 * 1024))

    out = pl.pallas_call(
        mlp_kernel,
        out_shape=jax.ShapeDtypeStruct((Bp, Np), out_dtype),
        grid_spec=pltpu.PrefetchScalarGridSpec(
            num_scalar_prefetch=0,
            grid=grid,
            in_specs=[
                # batch-tiled activations; full (unpadded) K as last block dim
                pl.BlockSpec((TB, n_feature), lambda i, h: (i, 0)),
                # hidden-tiled first layer weights / bias
                pl.BlockSpec((n_feature, TH), lambda i, h: (0, h)),
                pl.BlockSpec((1, TH), lambda i, h: (0, h)),
                # hidden-tiled second layer weights; output bias resident
                pl.BlockSpec((TH, Np), lambda i, h: (h, 0)),
                pl.BlockSpec((1, Np), lambda i, h: (0, 0)),
            ],
            out_specs=pl.BlockSpec((TB, Np), lambda i, h: (i, 0)),
            scratch_shapes=[pltpu.VMEM((TB, Np), jnp.float32)],
        ),
        compiler_params=pltpu.CompilerParams(
            dimension_semantics=("parallel", "arbitrary"),
            vmem_limit_bytes=vmem_limit,
        ),
        cost_estimate=pl.CostEstimate(
            flops=flops, transcendentals=0, bytes_accessed=bytes_accessed),
    )(x_in, w1p, b1p, w2p, b2p)

    # Strip padding back to the logical output shape (already in out_dtype).
    return out[:batch, :n_output]


if __name__ == "__main__":
    # Small shapes consistent with Net(n_feature, n_hidden, n_output).
    batch, n_feature, n_hidden, n_output = 8, 16, 32, 4

    key = jax.random.PRNGKey(0)
    kx, k1, kb1, k2, kb2 = jax.random.split(key, 5)

    x = jax.random.normal(kx, (batch, n_feature), dtype=jnp.float32)

    # Deterministic parameter init (uniform, roughly torch Linear-style scale).
    lim1 = 1.0 / (n_feature ** 0.5)
    w1 = jax.random.uniform(k1, (n_feature, n_hidden), jnp.float32, -lim1, lim1)
    b1 = jax.random.uniform(kb1, (1, n_hidden), jnp.float32, -lim1, lim1)
    lim2 = 1.0 / (n_hidden ** 0.5)
    w2 = jax.random.uniform(k2, (n_hidden, n_output), jnp.float32, -lim2, lim2)
    b2 = jax.random.uniform(kb2, (1, n_output), jnp.float32, -lim2, lim2)

    # Pure-JAX reference of the forward semantics.
    ref = jnp.maximum(x @ w1 + b1, 0.0) @ w2 + b2

    # Exact f32 path (matches torch f32 semantics).
    out_f32 = jax.block_until_ready(
        net_forward(x, w1, b1, w2, b2, use_bf16=False))
    assert out_f32.shape == (batch, n_output)
    assert out_f32.dtype == x.dtype
    assert jnp.allclose(out_f32, ref, atol=1e-5, rtol=1e-5)

    # Default bf16-operand / f32-accumulate path (MXU-native on v5e/v6e/v7x).
    out_bf16 = jax.block_until_ready(net_forward(x, w1, b1, w2, b2))
    assert out_bf16.shape == (batch, n_output)
    assert jnp.allclose(out_bf16, ref, atol=1e-1, rtol=1e-1)

    print("KERNEL_OK")
</pallas_src>

<mosaic_0001>
module attributes {stable_mosaic.version = 11 : i64} {
  func.func @mlp_kernel(%arg0: i32, %arg1: i32, %arg2: memref<8x16xf32, #tpu.memory_space<vmem>>, %arg3: memref<16x128xf32, #tpu.memory_space<vmem>>, %arg4: memref<1x128xf32, #tpu.memory_space<vmem>>, %arg5: memref<128x128xf32, #tpu.memory_space<vmem>>, %arg6: memref<1x128xf32, #tpu.memory_space<vmem>>, %arg7: memref<8x128xf32, #tpu.memory_space<vmem>>, %arg8: memref<8x128xf32, #tpu.memory_space<vmem>>) attributes {dimension_semantics = [#tpu.dimension_semantics<parallel>, #tpu.dimension_semantics<arbitrary>], iteration_bounds = array<i64: 1, 1>, scalar_prefetch = 0 : i64, scratch_operands = 1 : i64, tpu.core_type = #tpu.core_type<tc>, window_params = [{transform_indices = @transform_0, window_bounds = array<i64: 8, 16>}, {transform_indices = @transform_1, window_bounds = array<i64: 16, 128>}, {transform_indices = @transform_2, window_bounds = array<i64: 1, 128>}, {transform_indices = @transform_3, window_bounds = array<i64: 128, 128>}, {pipeline_mode = #tpu.pipeline_mode<synchronous>, transform_indices = @transform_4, window_bounds = array<i64: 1, 128>}, {transform_indices = @transform_5, window_bounds = array<i64: 8, 128>}]} {
    %c0_i32 = arith.constant 0 : i32
    %0 = arith.cmpi eq, %arg1, %c0_i32 : i32
    %1 = arith.extui %0 : i1 to i32
    %c0_i32_0 = arith.constant 0 : i32
    %2 = arith.cmpi ne, %1, %c0_i32_0 : i32
    scf.if %2 {
      %cst_16 = arith.constant 0.000000e+00 : f32
      %19 = vector.broadcast %cst_16 : f32 to vector<8x128xf32>
      %c0_17 = arith.constant 0 : index
      %c0_18 = arith.constant 0 : index
      %20 = vector.load %arg8[%c0_17, %c0_18] : memref<8x128xf32, #tpu.memory_space<vmem>>, vector<8x128xf32>
      tpu.vector_store %arg8[%c0_17, %c0_18], %19 {strides = array<i32>} : memref<8x128xf32, #tpu.memory_space<vmem>>, vector<8x128xf32>,
    } else {
    }
    %c0 = arith.constant 0 : index
    %c0_1 = arith.constant 0 : index
    %3 = vector.load %arg2[%c0, %c0_1] : memref<8x16xf32, #tpu.memory_space<vmem>>, vector<8x16xf32>
    %c0_2 = arith.constant 0 : index
    %c0_3 = arith.constant 0 : index
    %4 = vector.load %arg3[%c0_2, %c0_3] : memref<16x128xf32, #tpu.memory_space<vmem>>, vector<16x128xf32>
    %cst = arith.constant dense<0.000000e+00> : vector<8x128xf32>
    %5 = tpu.matmul %3, %4, %cst {dimension_numbers = #tpu.dot_dimension_numbers<[1], [0], [0], [1], [0, 0, 1, 1], [], []>} : vector<8x16xf32>, vector<16x128xf32>, vector<8x128xf32> -> vector<8x128xf32>
    %c0_4 = arith.constant 0 : index
    %c0_5 = arith.constant 0 : index
    %6 = vector.load %arg4[%c0_4, %c0_5] : memref<1x128xf32, #tpu.memory_space<vmem>>, vector<1x128xf32>
    %7 = vector.broadcast %6 : vector<1x128xf32> to vector<8x128xf32>
    %8 = arith.addf %5, %7 : vector<8x128xf32>
    %cst_6 = arith.constant 0.000000e+00 : f32
    %9 = vector.broadcast %cst_6 : f32 to vector<8x128xf32>
    %10 = arith.maximumf %8, %9 : vector<8x128xf32>
    %c0_7 = arith.constant 0 : index
    %c0_8 = arith.constant 0 : index
    %11 = vector.load %arg8[%c0_7, %c0_8] : memref<8x128xf32, #tpu.memory_space<vmem>>, vector<8x128xf32>
    %c0_9 = arith.constant 0 : index
    %c0_10 = arith.constant 0 : index
    %12 = vector.load %arg5[%c0_9, %c0_10] : memref<128x128xf32, #tpu.memory_space<vmem>>, vector<128x128xf32>
    %cst_11 = arith.constant dense<0.000000e+00> : vector<8x128xf32>
    %13 = tpu.matmul %10, %12, %cst_11 {dimension_numbers = #tpu.dot_dimension_numbers<[1], [0], [0], [1], [0, 0, 1, 1], [], []>} : vector<8x128xf32>, vector<128x128xf32>, vector<8x128xf32> -> vector<8x128xf32>
    %14 = arith.addf %11, %13 : vector<8x128xf32>
    %c0_12 = arith.constant 0 : index
    %c0_13 = arith.constant 0 : index
    %15 = vector.load %arg8[%c0_12, %c0_13] : memref<8x128xf32, #tpu.memory_space<vmem>>, vector<8x128xf32>
    tpu.vector_store %arg8[%c0_12, %c0_13], %14 {strides = array<i32>} : memref<8x128xf32, #tpu.memory_space<vmem>>, vector<8x128xf32>,
    %c0_i32_14 = arith.constant 0 : i32
    %16 = arith.cmpi eq, %arg1, %c0_i32_14 : i32
    %17 = arith.extui %16 : i1 to i32
    %c0_i32_15 = arith.constant 0 : i32
    %18 = arith.cmpi ne, %17, %c0_i32_15 : i32
    scf.if %18 {
      %c0_16 = arith.constant 0 : index
      %c0_17 = arith.constant 0 : index
      %19 = vector.load %arg8[%c0_16, %c0_17] : memref<8x128xf32, #tpu.memory_space<vmem>>, vector<8x128xf32>
      %c0_18 = arith.constant 0 : index
      %c0_19 = arith.constant 0 : index
      %20 = vector.load %arg6[%c0_18, %c0_19] : memref<1x128xf32, #tpu.memory_space<vmem>>, vector<1x128xf32>
      %21 = vector.broadcast %20 : vector<1x128xf32> to vector<8x128xf32>
      %22 = arith.addf %19, %21 : vector<8x128xf32>
      %c0_20 = arith.constant 0 : index
      %c0_21 = arith.constant 0 : index
      %23 = vector.load %arg7[%c0_20, %c0_21] : memref<8x128xf32, #tpu.memory_space<vmem>>, vector<8x128xf32>
      tpu.vector_store %arg7[%c0_20, %c0_21], %22 {strides = array<i32>} : memref<8x128xf32, #tpu.memory_space<vmem>>, vector<8x128xf32>,
    } else {
    }
    return
  }
  func.func @transform_0(%arg0: i32, %arg1: i32) -> (i32, i32) {
    %c0_i32 = arith.constant 0 : i32
    %c0_i32_0 = arith.constant 0 : i32
    return %arg0, %c0_i32 : i32, i32
  }
  func.func @transform_1(%arg0: i32, %arg1: i32) -> (i32, i32) {
    %c0_i32 = arith.constant 0 : i32
    %c0_i32_0 = arith.constant 0 : i32
    return %c0_i32, %arg1 : i32, i32
  }
  func.func @transform_2(%arg0: i32, %arg1: i32) -> (i32, i32) {
    %c0_i32 = arith.constant 0 : i32
    %c0_i32_0 = arith.constant 0 : i32
    return %c0_i32, %arg1 : i32, i32
  }
  func.func @transform_3(%arg0: i32, %arg1: i32) -> (i32, i32) {
    %c0_i32 = arith.constant 0 : i32
    %c0_i32_0 = arith.constant 0 : i32
    return %arg1, %c0_i32 : i32, i32
  }
  func.func @transform_4(%arg0: i32, %arg1: i32) -> (i32, i32) {
    %c0_i32 = arith.constant 0 : i32
    %c0_i32_0 = arith.constant 0 : i32
    %c0_i32_1 = arith.constant 0 : i32
    return %c0_i32, %c0_i32_0 : i32, i32
  }
  func.func @transform_5(%arg0: i32, %arg1: i32) -> (i32, i32) {
    %c0_i32 = arith.constant 0 : i32
    %c0_i32_0 = arith.constant 0 : i32
    return %arg0, %c0_i32 : i32, i32
  }
}

</mosaic_0001>

<llo_original>
// kernel: net_forward.1
$region0: #{net_forward.1}
  #allocation0 [shape = 'u32[]', space=smem, size = 0x4, offset = 0x4, fixed_abs, tag = 'smem constant byte address 0x4 - core index']
  #allocation1 [shape = 'u32[144,128]{1,0:T(1,128)}', space=vmem, size = 0x12000, scoped, tag = 'internal scratch']
  #allocation2 [shape = 'f32[8,128]{1,0:T(8,128)}', space=vmem, size = 0x1000, scoped, tag = 'scratch operand']
  %s0 = inlined_call_operand.vmem [shape: f32[8,16], index: 0, kind: input, shape index: {}]
  %s1 = inlined_call_operand.vmem [shape: f32[16,128], index: 1, kind: input, shape index: {}]
  %s2 = inlined_call_operand.vmem [shape: f32[1,128], index: 2, kind: input, shape index: {}]
  %s3 = inlined_call_operand.vmem [shape: f32[128,128], index: 3, kind: input, shape index: {}]
  %s4 = inlined_call_operand.vmem [shape: f32[1,128], index: 4, kind: input, shape index: {}]
  %s5 = inlined_call_operand.vmem [shape: f32[8,128], index: 5, kind: output, shape index: {}]
  %s6 = sld [smem:[#allocation0]]
  $region38: #{net_forward.1} parent=0
    _
  %s8 = ssub.s32 1, %s6
  %s9 = scalar_select 0, %s8, %s6
  // Predicated region
  $region2: #{net_forward.1} parent=0 // pred_check
    _
  $region3: #{net_forward.1} parent=0 // pred_check_branch
    %11 = sbr.rel (0) target = $region5
  $region4: #{net_forward.1} parent=0 // pred_region
    _
  $region5: #{net_forward.1} parent=0 // pred_fallthru
    _
  // Predicated region
  $region6: #{net_forward.1} parent=0 // pred_check
    _
  $region7: #{net_forward.1} parent=0 // pred_check_branch
    %13 = sbr.rel (0) target = $region9
  $region8: #{net_forward.1} parent=0 // pred_region
    _
  $region9: #{net_forward.1} parent=0 // pred_fallthru
    _
  // Predicated region
  $region10: #{net_forward.1} parent=0 // pred_check
    _
  $region11: #{net_forward.1} parent=0 // pred_check_branch
    %15 = sbr.rel (0) target = $region13
  $region12: #{net_forward.1} parent=0 // pred_region
    _
  $region13: #{net_forward.1} parent=0 // pred_fallthru
    _
  // Predicated region
  $region14: #{net_forward.1} parent=0 // pred_check
    _
  $region15: #{net_forward.1} parent=0 // pred_check_branch
    %17 = sbr.rel (0) target = $region17
  $region16: #{net_forward.1} parent=0 // pred_region
    _
  $region17: #{net_forward.1} parent=0 // pred_fallthru
    _
  // Predicated region
  $region18: #{net_forward.1} parent=0 // pred_check
    _
  $region19: #{net_forward.1} parent=0 // pred_check_branch
    %19 = sbr.rel (0) target = $region21
  $region20: #{net_forward.1} parent=0 // pred_region
    _
  $region21: #{net_forward.1} parent=0 // pred_fallthru
    _
  %p20 = scmp.eq.s32.totalorder 0, 0
  // Predicated region
  $region22: #{net_forward.1} parent=0 // pred_check
    %p21 = pneg %p20
  $region23: #{net_forward.1} parent=0 // pred_check_branch
    %23 = sbr.rel (%p21) target = $region25
  $region24: #{net_forward.1} parent=0 // pred_region
    %24 = vst [vmem:[#allocation2] sm:$0xff] 0.0
  $region25: #{net_forward.1} parent=0 // pred_fallthru
    _
  %v25 = vld [vmem:[%s0] sm:$0xff]
  %v26 = vld [vmem:[%s1] sm:$0xff]
  %v27 = vld [vmem:[%s1 + $0x8] sm:$0xff]
  %v28 = vld [vmem:[%s2] sm:$0x1]
  %v30 = vlaneseq
  %v31 = vshrl.u32 %v30, 7
  %v32 = vsub.s32 0, %v31
  %v33 = vrot.slane %v28, %v32
  %vm35 = vcmask 130048
  %v37 = vsel %vm35, %v25, 0
  %39 = vmatprep.subr.mxu0 0.0
  %40 = vmatpush1.msra.mxu0 %v26
  %41 = vmatprep.subr.mxu0 0.0
  %42 = vmatpush1.msra.mxu0 %v27
  %43 = vmatprep.subr.mxu0 0.0
  %44 = vmatpush1.msra.mxu0 0.0
  %45 = vmatprep.subr.mxu0 0.0
  %46 = vmatpush1.msra.mxu0 0.0
  %47 = vmatprep.subr.mxu0 0.0
  %48 = vmatpush1.msra.mxu0 0.0
  %49 = vmatprep.subr.mxu0 0.0
  %50 = vmatpush1.msra.mxu0 0.0
  %51 = vmatprep.subr.mxu0 0.0
  %52 = vmatpush1.msra.mxu0 0.0
  %53 = vmatprep.subr.mxu0 0.0
  %54 = vmatpush1.msra.mxu0 0.0
  %55 = vmatprep.subr.mxu0 0.0
  %56 = vmatpush1.msra.mxu0 0.0
  %57 = vmatprep.subr.mxu0 0.0
  %58 = vmatpush1.msra.mxu0 0.0
  %59 = vmatprep.subr.mxu0 0.0
  %60 = vmatpush1.msra.mxu0 0.0
  %61 = vmatprep.subr.mxu0 0.0
  %62 = vmatpush1.msra.mxu0 0.0
  %63 = vmatprep.subr.mxu0 0.0
  %64 = vmatpush1.msra.mxu0 0.0
  %65 = vmatprep.subr.mxu0 0.0
  %66 = vmatpush1.msra.mxu0 0.0
  %67 = vmatprep.subr.mxu0 0.0
  %68 = vmatpush1.msra.mxu0 0.0
  %69 = vmatprep.subr.mxu0 0.0
  %70 = vmatpush1.msra.mxu0 0.0
  %71 = vmatprep.subr.mxu0 0.0
  %72 = vmatpush1.msra.mxu0 0.0
  %73 = vmatprep.subr.mxu0 0.0
  %74 = vmatpush1.msra.mxu0 0.0
  %75 = vmatprep.subr.mxu0 0.0
  %76 = vmatpush1.msra.mxu0 0.0
  %77 = vmatprep.subr.mxu0 0.0
  %78 = vmatpush1.msra.mxu0 0.0
  %79 = vmatprep.subr.mxu0 0.0
  %80 = vmatpush1.msra.mxu0 0.0
  %81 = vmatprep.subr.mxu0 0.0
  %82 = vmatpush1.msra.mxu0 0.0
  %83 = vmatprep.subr.mxu0 0.0
  %84 = vmatpush1.msra.mxu0 0.0
  %85 = vmatprep.subr.mxu0 0.0
  %86 = vmatpush1.msra.mxu0 0.0
  %87 = vmatprep.subr.mxu0 0.0
  %88 = vmatpush1.msra.mxu0 0.0
  %89 = vmatprep.subr.mxu0 0.0
  %90 = vmatpush1.msra.mxu0 0.0
  %91 = vmatprep.subr.mxu0 0.0
  %92 = vmatpush1.msra.mxu0 0.0
  %93 = vmatprep.subr.mxu0 0.0
  %94 = vmatpush1.msra.mxu0 0.0
  %95 = vmatprep.subr.mxu0 0.0
  %96 = vmatpush1.msra.mxu0 0.0
  %97 = vmatprep.subr.mxu0 0.0
  %98 = vmatpush1.msra.mxu0 0.0
  %99 = vmatprep.subr.mxu0 0.0
  %100 = vmatpush1.msra.mxu0 0.0
  %101 = vmatprep.subr.mxu0 0.0
  %102 = vmatpush1.msra.mxu0 0.0
  %103 = vmatprep.mubr.f32.mxu0 0.0
  %104 = vmatmul.mubr.f32.gmra.mrb[0].mxu0 %v37
  %v105 = vpop.f32.mrb[0].mxu0
  %v106 = vadd.f32 %v33, %v105
  %v107 = vpop.f32.mrb[0].mxu0
  %108 = vdwg.mxu0
  %v109 = vmax.f32 %v106, 0.0
  %v110 = vld [vmem:[#allocation2] sm:$0xff]
  %v111 = vld [vmem:[%s3] sm:$0xff]
  %v112 = vld [vmem:[%s3 + $0x8] sm:$0xff]
  %v113 = vld [vmem:[%s3 + $0x10] sm:$0xff]
  %v114 = vld [vmem:[%s3 + $0x18] sm:$0xff]
  %v115 = vld [vmem:[%s3 + $0x20] sm:$0xff]
  %v116 = vld [vmem:[%s3 + $0x28] sm:$0xff]
  %v117 = vld [vmem:[%s3 + $0x30] sm:$0xff]
  %v118 = vld [vmem:[%s3 + $0x38] sm:$0xff]
  %v119 = vld [vmem:[%s3 + $0x40] sm:$0xff]
  %v120 = vld [vmem:[%s3 + $0x48] sm:$0xff]
  %v121 = vld [vmem:[%s3 + $0x50] sm:$0xff]
  %v122 = vld [vmem:[%s3 + $0x58] sm:$0xff]
  %v123 = vld [vmem:[%s3 + $0x60] sm:$0xff]
  %v124 = vld [vmem:[%s3 + $0x68] sm:$0xff]
  %v125 = vld [vmem:[%s3 + $0x70] sm:$0xff]
  %v126 = vld [vmem:[%s3 + $0x78] sm:$0xff]
  %127 = vmatprep.subr.mxu0 0.0
  %128 = vmatpush1.msra.mxu0 %v111
  %129 = vmatprep.subr.mxu0 0.0
  %130 = vmatpush1.msra.mxu0 %v112
  %131 = vmatprep.subr.mxu0 0.0
  %132 = vmatpush1.msra.mxu0 %v113
  %133 = vmatprep.subr.mxu0 0.0
  %134 = vmatpush1.msra.mxu0 %v114
  %135 = vmatprep.subr.mxu0 0.0
  %136 = vmatpush1.msra.mxu0 %v115
  %137 = vmatprep.subr.mxu0 0.0
  %138 = vmatpush1.msra.mxu0 %v116
  %139 = vmatprep.subr.mxu0 0.0
  %140 = vmatpush1.msra.mxu0 %v117
  %141 = vmatprep.subr.mxu0 0.0
  %142 = vmatpush1.msra.mxu0 %v118
  %143 = vmatprep.subr.mxu0 0.0
  %144 = vmatpush1.msra.mxu0 %v119
  %145 = vmatprep.subr.mxu0 0.0
  %146 = vmatpush1.msra.mxu0 %v120
  %147 = vmatprep.subr.mxu0 0.0
  %148 = vmatpush1.msra.mxu0 %v121
  %149 = vmatprep.subr.mxu0 0.0
  %150 = vmatpush1.msra.mxu0 %v122
  %151 = vmatprep.subr.mxu0 0.0
  %152 = vmatpush1.msra.mxu0 %v123
  %153 = vmatprep.subr.mxu0 0.0
  %154 = vmatpush1.msra.mxu0 %v124
  %155 = vmatprep.subr.mxu0 0.0
  %156 = vmatpush1.msra.mxu0 %v125
  %157 = vmatprep.subr.mxu0 0.0
  %158 = vmatpush1.msra.mxu0 %v126
  %159 = vmatprep.subr.mxu0 0.0
  %160 = vmatpush1.msra.mxu0 0.0
  %161 = vmatprep.subr.mxu0 0.0
  %162 = vmatpush1.msra.mxu0 0.0
  %163 = vmatprep.subr.mxu0 0.0
  %164 = vmatpush1.msra.mxu0 0.0
  %165 = vmatprep.subr.mxu0 0.0
  %166 = vmatpush1.msra.mxu0 0.0
  %167 = vmatprep.subr.mxu0 0.0
  %168 = vmatpush1.msra.mxu0 0.0
  %169 = vmatprep.subr.mxu0 0.0
  %170 = vmatpush1.msra.mxu0 0.0
  %171 = vmatprep.subr.mxu0 0.0
  %172 = vmatpush1.msra.mxu0 0.0
  %173 = vmatprep.subr.mxu0 0.0
  %174 = vmatpush1.msra.mxu0 0.0
  %175 = vmatprep.subr.mxu0 0.0
  %176 = vmatpush1.msra.mxu0 0.0
  %177 = vmatprep.subr.mxu0 0.0
  %178 = vmatpush1.msra.mxu0 0.0
  %179 = vmatprep.subr.mxu0 0.0
  %180 = vmatpush1.msra.mxu0 0.0
  %181 = vmatprep.subr.mxu0 0.0
  %182 = vmatpush1.msra.mxu0 0.0
  %183 = vmatprep.subr.mxu0 0.0
  %184 = vmatpush1.msra.mxu0 0.0
  %185 = vmatprep.subr.mxu0 0.0
  %186 = vmatpush1.msra.mxu0 0.0
  %187 = vmatprep.subr.mxu0 0.0
  %188 = vmatpush1.msra.mxu0 0.0
  %189 = vmatprep.subr.mxu0 0.0
  %190 = vmatpush1.msra.mxu0 0.0
  %191 = vmatprep.mubr.f32.mxu0 0.0
  %192 = vmatmul.mubr.f32.gmra.mrb[0].mxu0 %v109
  %v193 = vpop.f32.mrb[0].mxu0
  %v194 = vadd.f32 0.0, %v193
  %v195 = vpop.f32.mrb[0].mxu0
  %196 = vdwg.mxu0
  %v197 = vadd.f32 %v110, %v194
  %198 = vst [vmem:[#allocation2] sm:$0xff] %v197
  // Predicated region
  $region26: #{net_forward.1} parent=0 // pred_check
    %p199 = pneg %p20
  $region27: #{net_forward.1} parent=0 // pred_check_branch
    %201 = sbr.rel (%p199) target = $region29
  $region28: #{net_forward.1} parent=0 // pred_region
    %v202 = vld [vmem:[#allocation2] sm:$0xff]
    %v203 = vld [vmem:[%s4] sm:$0x1]
    %v205 = vlaneseq
    %v206 = vshrl.u32 %v205, 7
    %v207 = vsub.s32 0, %v206
    %v208 = vrot.slane %v203, %v207
    %v210 = vadd.f32 %v202, %v208
    %211 = vst [vmem:[%s5] sm:$0xff] %v210
  $region29: #{net_forward.1} parent=0 // pred_fallthru
    _
  // Predicated region
  $region30: #{net_forward.1} parent=0 // pred_check
    _
  $region31: #{net_forward.1} parent=0 // pred_check_branch
    %213 = sbr.rel (0) target = $region33
  $region32: #{net_forward.1} parent=0 // pred_region
    _
  $region33: #{net_forward.1} parent=0 // pred_fallthru
    _
  // Predicated region
  $region34: #{net_forward.1} parent=0 // pred_check
    _
  $region35: #{net_forward.1} parent=0 // pred_check_branch
    %215 = sbr.rel (0) target = $region37
  $region36: #{net_forward.1} parent=0 // pred_region
    _
  $region37: #{net_forward.1} parent=0 // pred_fallthru
    _

</llo_original>
